<compile_context>
chip_gen: v6e
topology: v6e:2x2x1
jax: 0.10.0
libtpu: 0.0.40
codegen_flags: <defaults>
</compile_context>

<pallas_src>
import math
import functools

import jax
import jax.numpy as jnp
from jax.experimental import pallas as pl
from jax.experimental.pallas import tpu as pltpu


def _gnll_partial_kernel(pred_ref, tgt_ref, partial_ref, *,
                         d: int, eps: float, n: int, tile_n: int):
    pred = pred_ref[...].astype(jnp.float32)
    mean = pred[:, :d]
    var = pred[:, d:]
    tgt = tgt_ref[...].astype(jnp.float32)

    # TODO(synk): PyTorch raises ValueError if any var < 0; there is no error
    # path on TPU, so we clamp with eps (same as the torch hot path after its
    # validity check).
    var = jnp.maximum(var, eps)
    diff = mean - tgt
    # Accumulate the un-scaled term only; the 0.5 factor and the optional
    # "full" constant are hoisted into the wrapper's finalize step.
    loss = jnp.log(var) + diff * diff / var

    if n % tile_n != 0:  # static: mask only when the grid is ragged
        row = (jax.lax.broadcasted_iota(jnp.int32, loss.shape, 0)
               + pl.program_id(0) * tile_n)
        loss = jnp.where(row < n, loss, 0.0)

    # One sublane reduce per (large) tile; no loop-carried scalar dependency.
    partial_ref[...] = jnp.sum(loss, axis=0, keepdims=True)


def _round_up(x: int, m: int) -> int:
    return ((x + m - 1) // m) * m


def gaussian_nll_loss(pred: jax.Array, target: jax.Array,
                      *, full: bool = False, eps: float = 1e-6,
                      reduction: str = "mean",
                      tile_n: int | None = None) -> jax.Array:
    """Pallas TPU implementation of GaussianNLLLoss.forward.

    pred:   (N, 2*D)  -> mean = pred[:, :D], var = pred[:, D:]
    target: (N, D)
    Returns a scalar (reduction in {"mean", "sum"}).
    """
    if reduction not in ("mean", "sum"):
        # TODO(synk): reduction='none' (per-element output) not implemented.
        raise NotImplementedError(f"reduction={reduction!r} not supported")

    n, two_d = pred.shape
    d = two_d // 2
    assert two_d == 2 * d and target.shape == (n, d)

    if tile_n is None:
        # Size blocks so (pred_block + target_block) * 2 pipeline buffers stay
        # within ~8 MiB -> safe under every generation's default scoped VMEM
        # (16 MiB v5e, 32 MiB v6e/v7x) without raising vmem_limit_bytes.
        bytes_per_row = (two_d + d) * 4 * 2  # f32 compute, double-buffered
        budget = 8 * 1024 * 1024
        tile_n = max(8, min(budget // bytes_per_row, 16384))
    tile_n = max(8, (tile_n // 8) * 8)          # sublane multiple
    tile_n = min(tile_n, _round_up(n, 8))       # don't exceed (rounded) N

    num_tiles = -(-n // tile_n)                 # cdiv

    kernel = functools.partial(
        _gnll_partial_kernel, d=d, eps=eps, n=n, tile_n=tile_n)

    partials = pl.pallas_call(
        kernel,
        out_shape=jax.ShapeDtypeStruct((num_tiles, d), jnp.float32),
        grid_spec=pltpu.PrefetchScalarGridSpec(
            num_scalar_prefetch=0,
            grid=(num_tiles,),
            in_specs=[
                # Fused pred block: one DMA of the original array, split in VMEM.
                pl.BlockSpec((tile_n, two_d), lambda i: (i, 0)),
                pl.BlockSpec((tile_n, d), lambda i: (i, 0)),
            ],
            out_specs=pl.BlockSpec((1, d), lambda i: (i, 0)),
        ),
        compiler_params=pltpu.CompilerParams(
            # Independent per-tile partial sums -> parallel (uses both TCs on v7x).
            dimension_semantics=("parallel",)),
    )(pred, target)

    total = 0.5 * jnp.sum(partials)
    count = n * d
    if full:
        total = total + jnp.float32(0.5 * math.log(2.0 * math.pi) * count)
    if reduction == "mean":
        total = total / jnp.float32(count)
    return total


def _reference(pred, target, *, full=False, eps=1e-6, reduction="mean"):
    d = pred.shape[-1] // 2
    mean, var = pred[..., :d], pred[..., d:]
    var = jnp.maximum(var.astype(jnp.float32), eps)
    diff = mean.astype(jnp.float32) - target.astype(jnp.float32)
    loss = 0.5 * (jnp.log(var) + diff * diff / var)
    if full:
        loss = loss + 0.5 * math.log(2.0 * math.pi)
    return jnp.mean(loss) if reduction == "mean" else jnp.sum(loss)


if __name__ == "__main__":
    key = jax.random.PRNGKey(0)
    k_pred, k_tgt = jax.random.split(key)

    N, D = 16, 32  # batch*seq = 16, hidden = 32 -> pred has 2*D = 64 features
    pred = jax.random.normal(k_pred, (N, 2 * D), dtype=jnp.float32)
    # make var strictly positive, as the loss expects var >= 0
    pred = pred.at[:, D:].set(jnp.abs(pred[:, D:]) + 0.1)
    target = jax.random.normal(k_tgt, (N, D), dtype=jnp.float32)

    # default config: mean reduction, full=False
    out = gaussian_nll_loss(pred, target, full=False, eps=1e-6, reduction="mean")
    out = jax.block_until_ready(out)
    ref = _reference(pred, target, full=False, eps=1e-6, reduction="mean")
    assert jnp.allclose(out, ref, rtol=1e-5, atol=1e-5), (out, ref)

    # full=True, sum reduction
    out2 = jax.block_until_ready(
        gaussian_nll_loss(pred, target, full=True, eps=1e-6, reduction="sum"))
    ref2 = _reference(pred, target, full=True, eps=1e-6, reduction="sum")
    assert jnp.allclose(out2, ref2, rtol=1e-5, atol=1e-5), (out2, ref2)

    # ragged N exercising the cdiv grid + masking path with multiple tiles
    N3 = 13
    pred3, target3 = pred[:N3], target[:N3]
    out3 = jax.block_until_ready(
        gaussian_nll_loss(pred3, target3, full=False, eps=1e-6,
                          reduction="mean", tile_n=8))
    ref3 = _reference(pred3, target3, full=False, eps=1e-6, reduction="mean")
    assert jnp.allclose(out3, ref3, rtol=1e-5, atol=1e-5), (out3, ref3)

    print("KERNEL_OK")
</pallas_src>

<mosaic_0001>
module attributes {stable_mosaic.version = 11 : i64} {
  func.func @_gnll_partial_kernel(%arg0: i32, %arg1: memref<16x64xf32, #tpu.memory_space<vmem>>, %arg2: memref<16x32xf32, #tpu.memory_space<vmem>>, %arg3: memref<1x32xf32, #tpu.memory_space<vmem>>) attributes {dimension_semantics = [#tpu.dimension_semantics<parallel>], iteration_bounds = array<i64: 1>, scalar_prefetch = 0 : i64, scratch_operands = 0 : i64, tpu.core_type = #tpu.core_type<tc>, window_params = [{transform_indices = @transform_0, window_bounds = array<i64: 16, 64>}, {transform_indices = @transform_1, window_bounds = array<i64: 16, 32>}, {transform_indices = @transform_2, window_bounds = array<i64: 1, 32>}]} {
    %c0 = arith.constant 0 : index
    %c0_0 = arith.constant 0 : index
    %0 = vector.load %arg1[%c0, %c0_0] : memref<16x64xf32, #tpu.memory_space<vmem>>, vector<16x64xf32>
    %1 = vector.extract_strided_slice %0 {offsets = [0, 0], sizes = [16, 32], strides = [1, 1]} : vector<16x64xf32> to vector<16x32xf32>
    %2 = vector.extract_strided_slice %0 {offsets = [0, 32], sizes = [16, 32], strides = [1, 1]} : vector<16x64xf32> to vector<16x32xf32>
    %c0_1 = arith.constant 0 : index
    %c0_2 = arith.constant 0 : index
    %3 = vector.load %arg2[%c0_1, %c0_2] : memref<16x32xf32, #tpu.memory_space<vmem>>, vector<16x32xf32>
    %cst = arith.constant 9.99999997E-7 : f32
    %4 = vector.broadcast %cst : f32 to vector<16x32xf32>
    %5 = arith.maximumf %2, %4 : vector<16x32xf32>
    %6 = arith.subf %1, %3 : vector<16x32xf32>
    %7 = math.log %5 : vector<16x32xf32>
    %8 = arith.mulf %6, %6 : vector<16x32xf32>
    %9 = arith.divf %8, %5 : vector<16x32xf32>
    %10 = arith.addf %7, %9 : vector<16x32xf32>
    %cst_3 = arith.constant dense<0.000000e+00> : vector<32xf32>
    %11 = vector.multi_reduction <add>, %10, %cst_3 [0] : vector<16x32xf32> to vector<32xf32>
    %12 = vector.shape_cast %11 : vector<32xf32> to vector<1x32xf32>
    %c0_4 = arith.constant 0 : index
    %c0_5 = arith.constant 0 : index
    %13 = vector.load %arg3[%c0_4, %c0_5] : memref<1x32xf32, #tpu.memory_space<vmem>>, vector<1x32xf32>
    tpu.vector_store %arg3[%c0_4, %c0_5], %12 {strides = array<i32>} : memref<1x32xf32, #tpu.memory_space<vmem>>, vector<1x32xf32>,
    return
  }
  func.func @transform_0(%arg0: i32) -> (i32, i32) {
    %c0_i32 = arith.constant 0 : i32
    %c0_i32_0 = arith.constant 0 : i32
    return %arg0, %c0_i32 : i32, i32
  }
  func.func @transform_1(%arg0: i32) -> (i32, i32) {
    %c0_i32 = arith.constant 0 : i32
    %c0_i32_0 = arith.constant 0 : i32
    return %arg0, %c0_i32 : i32, i32
  }
  func.func @transform_2(%arg0: i32) -> (i32, i32) {
    %c0_i32 = arith.constant 0 : i32
    %c0_i32_0 = arith.constant 0 : i32
    return %arg0, %c0_i32 : i32, i32
  }
}

</mosaic_0001>

<llo_original>
// kernel: tpu_custom_call.1
$region0: #{tpu_custom_call.1}
  #allocation0 [shape = 'u32[]', space=smem, size = 0x4, offset = 0x4, fixed_abs, tag = 'smem constant byte address 0x4 - core index']
  #allocation1 [shape = 'u32[144,128]{1,0:T(1,128)}', space=vmem, size = 0x12000, scoped, tag = 'internal scratch']
  %s0 = inlined_call_operand.hbm [shape: f32[16,64], index: 0, kind: input, shape index: {}]
  %s1 = inlined_call_operand.hbm [shape: f32[16,32], index: 1, kind: input, shape index: {}]
  %s2 = inlined_call_operand.hbm [shape: f32[1,32], index: 2, kind: output, shape index: {}]
  %s3 = sld [smem:[#allocation0]]
  $region26: #{tpu_custom_call.1} parent=0
    _
  %s5 = ssub.s32 1, %s3
  %s6 = scalar_select 0, %s5, %s3
  $region1: #{tpu_custom_call.1} parent=0
    #allocation2 [shape = 'u8[8192]{0}', space=vmem, size = 0x2000, scoped, tag = 'input window, operand 0, single buffered']
    #allocation3 [shape = 's32[1]{0}', space=sflag, size = 0x4, scoped, tag = 'scoped memory for tpu_custom_call.1']
    #allocation4 [shape = 's32[1]{0}', space=sflag, size = 0x4, scoped, tag = 'scoped memory for tpu_custom_call.1']
    #allocation5 [shape = 'u8[8192]{0}', space=vmem, size = 0x2000, scoped, tag = 'input window, operand 1, single buffered']
    #allocation6 [shape = 's32[1]{0}', space=sflag, size = 0x4, scoped, tag = 'scoped memory for tpu_custom_call.1']
    #allocation7 [shape = 'u8[512]{0}', space=vmem, size = 0x400, scoped, tag = 'output window, operand 0, single buffered']
    %7 = vsyncpa [#allocation3], 0
    %8 = vsyncpa [#allocation6], 0
    %9 = vsyncpa [#allocation4], 0
    // Predicated region
    $region2: #{tpu_custom_call.1} parent=1 // pred_check
      _
    $region3: #{tpu_custom_call.1} parent=1 // pred_check_branch
      %11 = sbr.rel (0) target = $region5
    $region4: #{tpu_custom_call.1} parent=1 // pred_region
      %s13 = ssub.s32 256, 256
      %14 = vsyncadd [#allocation3], %s13
      %s15 = sshll.u32 [#allocation2], 4
      %s16 = int_to_ptr.vmem [resolvable:$true] %s15
      %21 = dma.hbm_to_vmem [thread:$0]  %s0, 256, %s16, [#allocation3], 128, 128, 8
    $region5: #{tpu_custom_call.1} parent=1 // pred_fallthru
      _
    // Predicated region
    $region6: #{tpu_custom_call.1} parent=1 // pred_check
      _
    $region7: #{tpu_custom_call.1} parent=1 // pred_check_branch
      %23 = sbr.rel (0) target = $region9
    $region8: #{tpu_custom_call.1} parent=1 // pred_region
      %s25 = ssub.s32 256, 256
      %26 = vsyncadd [#allocation6], %s25
      %s27 = sshll.u32 [#allocation5], 4
      %s28 = int_to_ptr.vmem [resolvable:$true] %s27
      %33 = dma.hbm_to_vmem [thread:$0]  %s1, 256, %s28, [#allocation6], 128, 128, 8
    $region9: #{tpu_custom_call.1} parent=1 // pred_fallthru
      _
    // Predicated region
    $region10: #{tpu_custom_call.1} parent=1 // pred_check
      _
    $region11: #{tpu_custom_call.1} parent=1 // pred_check_branch
      %35 = sbr.rel (0) target = $region13
    $region12: #{tpu_custom_call.1} parent=1 // pred_region
      %36 = dma.done [#allocation3], 256
    $region13: #{tpu_custom_call.1} parent=1 // pred_fallthru
      _
    // Predicated region
    $region14: #{tpu_custom_call.1} parent=1 // pred_check
      _
    $region15: #{tpu_custom_call.1} parent=1 // pred_check_branch
      %38 = sbr.rel (0) target = $region17
    $region16: #{tpu_custom_call.1} parent=1 // pred_region
      %39 = dma.done [#allocation6], 256
    $region17: #{tpu_custom_call.1} parent=1 // pred_fallthru
      _
    %v40 = vld [vmem:[#allocation2] sm:$0xff]
    %v41 = vld [vmem:[#allocation2 + $0x8] sm:$0xff]
    %v42 = vld [vmem:[#allocation5] sm:$0xff]
    %v43 = vld [vmem:[#allocation5 + $0x8] sm:$0xff]
    %v44 = vmax.f32 %v40, 1e-06
    %v45 = vmax.f32 %v41, 1e-06
    %v46 = vsub.f32 %v40, %v42
    %v47 = vsub.f32 %v41, %v43
    %v48 = vlog2.pop %v44
    %v49 = vmul.f32 %v48, 0.6931472
    %v50 = vlog2.pop %v45
    %v51 = vmul.f32 %v50, 0.6931472
    %v52 = vmul.f32 %v46, %v46
    %v53 = vmul.f32 %v47, %v47
    %56 = vrot.lane.b32.xlu0 %v44, 96
    %v57 = vpop.permute.xlu0 %56
    %58 = vrot.lane.b32.xlu0 %v45, 96
    %v59 = vpop.permute.xlu0 %58
    %v62 = vrcp.pop %v57
    %v63 = vmul.f32 %v52, %v62
    %v64 = vrcp.pop %v59
    %v65 = vmul.f32 %v53, %v64
    %68 = vrot.lane.b32.xlu0 %v63, 32
    %v69 = vpop.permute.xlu0 %68
    %70 = vrot.lane.b32.xlu0 %v65, 32
    %v71 = vpop.permute.xlu0 %70
    %v74 = vadd.f32 %v49, %v69
    %v75 = vadd.f32 %v51, %v71
    %vm76 = vcmask 523520
    %v77 = vsel %vm76, %v74, 0.0
    %v78 = vsel %vm76, %v75, 0.0
    %v79 = vadd.f32 %v77, %v78
    %v80 = vrot.slane %v79, 4
    %v81 = vadd.f32 %v79, %v80
    %v82 = vrot.slane %v81, 2
    %v83 = vadd.f32 %v81, %v82
    %v84 = vrot.slane %v83, 1
    %v85 = vadd.f32 %v83, %v84
    %87 = vrot.lane.b32.xlu0 %v85, 96
    %v88 = vpop.permute.xlu0 %87
    %vm90 = vcmask 253952
    %91 = vst.msk [vmem:[#allocation7] sm:$0x1] %vm90, %v88
    // Predicated region
    $region18: #{tpu_custom_call.1} parent=1 // pred_check
      _
    $region19: #{tpu_custom_call.1} parent=1 // pred_check_branch
      %93 = sbr.rel (0) target = $region21
    $region20: #{tpu_custom_call.1} parent=1 // pred_region
      %s95 = ssub.s32 16, 16
      %96 = vsyncadd [#allocation4], %s95
      %s98 = sshll.u32 [#allocation7], 4
      %s99 = int_to_ptr.vmem [resolvable:$true] %s98
      %101 = dma.vmem_to_hbm [thread:$0]  %s99, 16, %s2, [#allocation4]
    $region21: #{tpu_custom_call.1} parent=1 // pred_fallthru
      _
    // Predicated region
    $region22: #{tpu_custom_call.1} parent=1 // pred_check
      _
    $region23: #{tpu_custom_call.1} parent=1 // pred_check_branch
      %103 = sbr.rel (0) target = $region25
    $region24: #{tpu_custom_call.1} parent=1 // pred_region
      %104 = dma.done [#allocation4], 16
    $region25: #{tpu_custom_call.1} parent=1 // pred_fallthru
      _
    %105 = vsyncpa [#allocation3], 1
    %106 = vsyncpa [#allocation6], 1
    %107 = vsyncpa [#allocation4], 1

</llo_original>
